<compile_context>
chip_gen: v5e
topology: v5e:2x2
jax: 0.10.0
libtpu: 0.0.40
codegen_flags: <defaults>
</compile_context>

<pallas_src>
import jax
import jax.numpy as jnp
from jax import lax
from jax.experimental import pallas as pl
from jax.experimental.pallas import tpu as pltpu


def _make_proto_kernel(distance_metric, num_protos, tile_c):
    def kernel(r_ref, w_ref, o_ref):
        # L2-normalize reps rows (F.normalize, eps=1e-12) with rsqrt (EUP).
        r = r_ref[...].astype(jnp.float32)
        sumsq = jnp.sum(r * r, axis=-1, keepdims=True)
        r = r * lax.rsqrt(jnp.maximum(sumsq, 1e-24))

        w = w_ref[...]                                   # (D, P*tile_c), pre-normalized
        # One MXU matmul with P*tile_c output lanes, f32 accumulation.
        s = jnp.dot(r.astype(w.dtype), w, preferred_element_type=jnp.float32)

        # Max over the P prototype groups via static, 128-aligned lane slices.
        m = s[:, 0:tile_c]
        for p in range(1, num_protos):
            m = jnp.maximum(m, s[:, p * tile_c:(p + 1) * tile_c])

        if distance_metric != 'dot_product':
            # -||r - p||^2 = 2 r.p - 2 for unit-norm rows; monotone affine,
            # so apply once after the max.
            m = 2.0 * m - 2.0

        o_ref[...] = m.astype(o_ref.dtype)

    return kernel


def proto_classifier_forward(reps, prototypes, *, distance_metric='dot_product',
                             matmul_dtype=jnp.float32):
    """reps: (N, D); prototypes: stacked (C, P, D). Returns (N, C) scores."""
    reps = jnp.asarray(reps)
    prototypes = jnp.asarray(prototypes)
    N, D = reps.shape
    C, P, Dp = prototypes.shape
    assert D == Dp

    # --- tiling ---------------------------------------------------------
    # Batch tile: up to 512 rows (>= ~85% of HBM roofline), multiple of 8.
    tile_n = min(512, max(8, pl.cdiv(N, 8) * 8))
    grid_n = pl.cdiv(N, tile_n)                 # ragged last tile handled by Pallas

    # Class tile: lane-dense multiple of 128 (masked vst.msk avoided).
    tile_c = 128 * max(1, min(4, pl.cdiv(C, 128)))
    grid_c = pl.cdiv(C, tile_c)
    Cp = grid_c * tile_c

    # --- hoisted prototype prep (grid-invariant, plain XLA) --------------
    pn = prototypes.astype(jnp.float32)
    pn = pn * lax.rsqrt(jnp.maximum(jnp.sum(pn * pn, axis=-1, keepdims=True), 1e-24))
    pn = jnp.pad(pn, ((0, Cp - C), (0, 0), (0, 0)))          # (Cp, P, D)
    w = pn.reshape(grid_c, tile_c, P, D)
    w = jnp.transpose(w, (0, 3, 2, 1))                        # (Ct, D, P, tile_c)
    w = w.reshape(grid_c, D, P * tile_c).astype(matmul_dtype)

    # --- VMEM budget (double-buffered) ------------------------------------
    need = 2 * 4 * (tile_n * D + D * P * tile_c + tile_n * tile_c)
    vmem_limit = int(min(64 * 1024 * 1024, max(32 * 1024 * 1024, 2 * need)))

    out = pl.pallas_call(
        _make_proto_kernel(distance_metric, P, tile_c),
        out_shape=jax.ShapeDtypeStruct((N, Cp), reps.dtype),
        grid_spec=pltpu.PrefetchScalarGridSpec(
            num_scalar_prefetch=0,
            grid=(grid_n, grid_c),
            in_specs=[
                pl.BlockSpec((tile_n, D), lambda i, j: (i, 0)),
                pl.BlockSpec((None, D, P * tile_c), lambda i, j: (j, 0, 0)),
            ],
            out_specs=pl.BlockSpec((tile_n, tile_c), lambda i, j: (i, j)),
        ),
        compiler_params=pltpu.CompilerParams(
            dimension_semantics=("parallel", "parallel"),
            vmem_limit_bytes=vmem_limit),
    )(reps, w)

    return out[:, :C]


def _reference(reps, prototypes, distance_metric):
    """Pure-JAX mirror of the PyTorch forward."""
    r = reps / jnp.maximum(
        jnp.sqrt(jnp.sum(reps * reps, axis=1, keepdims=True)), 1e-12)
    scores = []
    for c in range(prototypes.shape[0]):
        p = prototypes[c]
        p = p / jnp.maximum(
            jnp.sqrt(jnp.sum(p * p, axis=1, keepdims=True)), 1e-12)
        if distance_metric == 'dot_product':
            cs = jnp.sum(r[None, :, :] * p[:, None, :], axis=-1)       # (P, N)
        else:
            cs = -jnp.sum((r[None, :, :] - p[:, None, :]) ** 2, axis=-1)
        scores.append(jnp.max(cs, axis=0))                             # (N,)
    return jnp.stack(scores).T                                         # (N, C)


if __name__ == "__main__":
    # small, module-consistent shapes
    N, D = 8, 32          # batch of reps, embedding dim
    C, P = 5, 4           # classes, prototypes per class

    key = jax.random.PRNGKey(0)
    k1, k2 = jax.random.split(key)
    reps = jax.random.normal(k1, (N, D), jnp.float32)
    prototypes = jax.random.normal(k2, (C, P, D), jnp.float32)

    ok = True
    for metric in ('dot_product', 'euclidean'):
        out = proto_classifier_forward(reps, prototypes,
                                       distance_metric=metric)
        out = jax.block_until_ready(out)
        ref = _reference(reps, prototypes, metric)
        assert out.shape == (N, C)
        ok &= bool(jnp.allclose(out, ref, atol=1e-4, rtol=1e-4))

    assert ok
    print("KERNEL_OK")
</pallas_src>

<mosaic_0001>
module attributes {stable_mosaic.version = 11 : i64} {
  func.func @kernel(%arg0: i32, %arg1: i32, %arg2: memref<8x32xf32, #tpu.memory_space<vmem>>, %arg3: memref<1x32x512xf32, #tpu.memory_space<vmem>>, %arg4: memref<8x128xf32, #tpu.memory_space<vmem>>) attributes {dimension_semantics = [#tpu.dimension_semantics<parallel>, #tpu.dimension_semantics<parallel>], iteration_bounds = array<i64: 1, 1>, scalar_prefetch = 0 : i64, scratch_operands = 0 : i64, tpu.core_type = #tpu.core_type<tc>, window_params = [{transform_indices = @transform_0, window_bounds = array<i64: 8, 32>}, {transform_indices = @transform_1, window_bounds = array<i64: 1, 32, 512>}, {transform_indices = @transform_2, window_bounds = array<i64: 8, 128>}]} {
    %c0 = arith.constant 0 : index
    %c0_0 = arith.constant 0 : index
    %0 = vector.load %arg2[%c0, %c0_0] : memref<8x32xf32, #tpu.memory_space<vmem>>, vector<8x32xf32>
    %1 = arith.mulf %0, %0 : vector<8x32xf32>
    %cst = arith.constant dense<0.000000e+00> : vector<8xf32>
    %2 = vector.multi_reduction <add>, %1, %cst [1] : vector<8x32xf32> to vector<8xf32>
    %3 = vector.shape_cast %2 : vector<8xf32> to vector<8x1xf32>
    %cst_1 = arith.constant 1.000000e-24 : f32
    %4 = vector.broadcast %cst_1 : f32 to vector<8x1xf32>
    %5 = arith.maximumf %3, %4 : vector<8x1xf32>
    %6 = math.rsqrt %5 : vector<8x1xf32>
    %7 = vector.broadcast %6 : vector<8x1xf32> to vector<8x32xf32>
    %8 = arith.mulf %0, %7 : vector<8x32xf32>
    %c0_2 = arith.constant 0 : index
    %c0_3 = arith.constant 0 : index
    %c0_4 = arith.constant 0 : index
    %9 = vector.load %arg3[%c0_2, %c0_3, %c0_4] : memref<1x32x512xf32, #tpu.memory_space<vmem>>, vector<1x32x512xf32>
    %10 = vector.shape_cast %9 : vector<1x32x512xf32> to vector<32x512xf32>
    %cst_5 = arith.constant dense<0.000000e+00> : vector<8x512xf32>
    %11 = tpu.matmul %8, %10, %cst_5 {dimension_numbers = #tpu.dot_dimension_numbers<[1], [0], [0], [1], [0, 0, 1, 1], [], []>} : vector<8x32xf32>, vector<32x512xf32>, vector<8x512xf32> -> vector<8x512xf32>
    %12 = vector.extract_strided_slice %11 {offsets = [0, 0], sizes = [8, 128], strides = [1, 1]} : vector<8x512xf32> to vector<8x128xf32>
    %13 = vector.extract_strided_slice %11 {offsets = [0, 128], sizes = [8, 128], strides = [1, 1]} : vector<8x512xf32> to vector<8x128xf32>
    %14 = arith.maximumf %12, %13 : vector<8x128xf32>
    %15 = vector.extract_strided_slice %11 {offsets = [0, 256], sizes = [8, 128], strides = [1, 1]} : vector<8x512xf32> to vector<8x128xf32>
    %16 = arith.maximumf %14, %15 : vector<8x128xf32>
    %17 = vector.extract_strided_slice %11 {offsets = [0, 384], sizes = [8, 128], strides = [1, 1]} : vector<8x512xf32> to vector<8x128xf32>
    %18 = arith.maximumf %16, %17 : vector<8x128xf32>
    %c0_6 = arith.constant 0 : index
    %c0_7 = arith.constant 0 : index
    %19 = vector.load %arg4[%c0_6, %c0_7] : memref<8x128xf32, #tpu.memory_space<vmem>>, vector<8x128xf32>
    tpu.vector_store %arg4[%c0_6, %c0_7], %18 {strides = array<i32>} : memref<8x128xf32, #tpu.memory_space<vmem>>, vector<8x128xf32>,
    return
  }
  func.func @transform_0(%arg0: i32, %arg1: i32) -> (i32, i32) {
    %c0_i32 = arith.constant 0 : i32
    %c0_i32_0 = arith.constant 0 : i32
    return %arg0, %c0_i32 : i32, i32
  }
  func.func @transform_1(%arg0: i32, %arg1: i32) -> (i32, i32, i32) {
    %c0_i32 = arith.constant 0 : i32
    %c0_i32_0 = arith.constant 0 : i32
    %c0_i32_1 = arith.constant 0 : i32
    return %arg1, %c0_i32, %c0_i32_0 : i32, i32, i32
  }
  func.func @transform_2(%arg0: i32, %arg1: i32) -> (i32, i32) {
    %c0_i32 = arith.constant 0 : i32
    return %arg0, %arg1 : i32, i32
  }
}

</mosaic_0001>

<llo_original>
// kernel: tpu_custom_call.1
$region0: #{tpu_custom_call.1}
  #allocation0 [shape = 'u32[]', space=smem, size = 0x4, offset = 0x4, fixed_abs, tag = 'smem constant byte address 0x4 - core index']
  #allocation1 [shape = 'u32[72,128]{1,0:T(1,128)}', space=vmem, size = 0x9000, scoped, tag = 'internal scratch']
  %s0 = inlined_call_operand.hbm [shape: f32[8,32], index: 0, kind: input, shape index: {}]
  %s1 = inlined_call_operand.hbm [shape: f32[1,32,512], index: 1, kind: input, shape index: {}]
  %s2 = inlined_call_operand.hbm [shape: f32[8,128], index: 2, kind: output, shape index: {}]
  %s3 = sld [smem:[#allocation0]]
  $region26: #{tpu_custom_call.1} parent=0
    _
  %s5 = ssub.s32 1, %s3
  %s6 = scalar_select 0, %s5, %s3
  $region1: #{tpu_custom_call.1} parent=0
    #allocation2 [shape = 'u8[4096]{0}', space=vmem, size = 0x1000, scoped, tag = 'input window, operand 0, single buffered']
    #allocation3 [shape = 's32[1]{0}', space=sflag, size = 0x4, scoped, tag = 'scoped memory for tpu_custom_call.1']
    #allocation4 [shape = 's32[1]{0}', space=sflag, size = 0x4, scoped, tag = 'scoped memory for tpu_custom_call.1']
    #allocation5 [shape = 'u8[65536]{0}', space=vmem, size = 0x10000, scoped, tag = 'input window, operand 1, single buffered']
    #allocation6 [shape = 's32[1]{0}', space=sflag, size = 0x4, scoped, tag = 'scoped memory for tpu_custom_call.1']
    #allocation7 [shape = 'u8[4096]{0}', space=vmem, size = 0x1000, scoped, tag = 'output window, operand 0, single buffered']
    %7 = vsyncpa [#allocation3], 0
    %8 = vsyncpa [#allocation6], 0
    %9 = vsyncpa [#allocation4], 0
    // Predicated region
    $region2: #{tpu_custom_call.1} parent=1 // pred_check
      _
    $region3: #{tpu_custom_call.1} parent=1 // pred_check_branch
      %11 = sbr.rel (0) target = $region5
    $region4: #{tpu_custom_call.1} parent=1 // pred_region
      %13 = vsyncadd [#allocation3], 0
      %s15 = sshll.u32 %s0, 4
      %s16 = int_to_ptr.hbm [resolvable:$true] %s15
      %s17 = sshll.u32 [#allocation2], 4
      %s18 = int_to_ptr.vmem [resolvable:$true] %s17
      %20 = dma.hbm_to_vmem [thread:$0]  %s16, 128, %s18, [#allocation3]
    $region5: #{tpu_custom_call.1} parent=1 // pred_fallthru
      _
    // Predicated region
    $region6: #{tpu_custom_call.1} parent=1 // pred_check
      _
    $region7: #{tpu_custom_call.1} parent=1 // pred_check_branch
      %22 = sbr.rel (0) target = $region9
    $region8: #{tpu_custom_call.1} parent=1 // pred_region
      %24 = vsyncadd [#allocation6], 0
      %s25 = sshll.u32 %s1, 4
      %s26 = int_to_ptr.hbm [resolvable:$true] %s25
      %s27 = sshll.u32 [#allocation5], 4
      %s28 = int_to_ptr.vmem [resolvable:$true] %s27
      %33 = dma.hbm_to_vmem [thread:$0]  %s26, 2048, %s28, [#allocation6], 512, 512, 32
    $region9: #{tpu_custom_call.1} parent=1 // pred_fallthru
      _
    // Predicated region
    $region10: #{tpu_custom_call.1} parent=1 // pred_check
      _
    $region11: #{tpu_custom_call.1} parent=1 // pred_check_branch
      %35 = sbr.rel (0) target = $region13
    $region12: #{tpu_custom_call.1} parent=1 // pred_region
      %37 = dma.done [#allocation3], 128
    $region13: #{tpu_custom_call.1} parent=1 // pred_fallthru
      _
    // Predicated region
    $region14: #{tpu_custom_call.1} parent=1 // pred_check
      _
    $region15: #{tpu_custom_call.1} parent=1 // pred_check_branch
      %39 = sbr.rel (0) target = $region17
    $region16: #{tpu_custom_call.1} parent=1 // pred_region
      %41 = dma.done [#allocation6], 2048
    $region17: #{tpu_custom_call.1} parent=1 // pred_fallthru
      _
    %v42 = vld [vmem:[#allocation2] sm:$0xff]
    %v43 = vmul.f32 %v42, %v42
    %vm44 = vcmask 261120
    %v45 = vsel %vm44, %v43, 0.0
    %46 = vadd.xlane.f32.xlu0 %v45
    %v47 = vpop.xlane.xlu0 %46
    %v48 = vmax.f32 %v47, 1e-24
    %v49 = vrsqrt.pop %v48
    %v50 = vmul.f32 %v49, %v48
    %v51 = vmul.f32 %v50, %v49
    %v52 = vmul.f32 0.5, %v51
    %v53 = vsub.f32 1.5, %v52
    %v54 = vmul.f32 %v49, %v53
    %vm55 = vweird.f32 %v48
    %vm56 = vweird.f32 %v49
    %vm57 = vmor %vm55, %vm56
    %v58 = vsel %vm57, %v49, %v54
    %v59 = vmul.f32 %v42, %v58
    %v60 = vld [vmem:[#allocation5] sm:$0xff]
    %v61 = vld [vmem:[#allocation5 + $0x8] sm:$0xff]
    %v62 = vld [vmem:[#allocation5 + $0x10] sm:$0xff]
    %v63 = vld [vmem:[#allocation5 + $0x18] sm:$0xff]
    %v64 = vld [vmem:[#allocation5 + $0x20] sm:$0xff]
    %v65 = vld [vmem:[#allocation5 + $0x28] sm:$0xff]
    %v66 = vld [vmem:[#allocation5 + $0x30] sm:$0xff]
    %v67 = vld [vmem:[#allocation5 + $0x38] sm:$0xff]
    %v68 = vld [vmem:[#allocation5 + $0x40] sm:$0xff]
    %v69 = vld [vmem:[#allocation5 + $0x48] sm:$0xff]
    %v70 = vld [vmem:[#allocation5 + $0x50] sm:$0xff]
    %v71 = vld [vmem:[#allocation5 + $0x58] sm:$0xff]
    %v72 = vld [vmem:[#allocation5 + $0x60] sm:$0xff]
    %v73 = vld [vmem:[#allocation5 + $0x68] sm:$0xff]
    %v74 = vld [vmem:[#allocation5 + $0x70] sm:$0xff]
    %v75 = vld [vmem:[#allocation5 + $0x78] sm:$0xff]
    %v77 = vsel %vm44, %v59, 0
    %79 = vmatpush.msra.mxu0 0.0
    %80 = vmatpush.msra.mxu0 0.0
    %81 = vmatpush.msra.mxu0 0.0
    %82 = vmatpush.msra.mxu0 0.0
    %83 = vmatpush.msra.mxu0 0.0
    %84 = vmatpush.msra.mxu0 0.0
    %85 = vmatpush.msra.mxu0 0.0
    %86 = vmatpush.msra.mxu0 0.0
    %87 = vmatpush.msra.mxu0 0.0
    %88 = vmatpush.msra.mxu0 0.0
    %89 = vmatpush.msra.mxu0 0.0
    %90 = vmatpush.msra.mxu0 0.0
    %91 = vmatpush.msra.mxu0 %v72
    %92 = vmatpush.msra.mxu0 %v68
    %93 = vmatpush.msra.mxu0 %v64
    %94 = vmatpush.msra.mxu0 %v60
    %95 = vmatmul.f32.gmra.mxu0 %v77
    %v96 = vpop.f32.mrf.mxu0
    %v97 = vadd.f32 0.0, %v96
    %98 = vdwg.mxu0
    %99 = vmatpush.msra.mxu0 0.0
    %100 = vmatpush.msra.mxu0 0.0
    %101 = vmatpush.msra.mxu0 0.0
    %102 = vmatpush.msra.mxu0 0.0
    %103 = vmatpush.msra.mxu0 0.0
    %104 = vmatpush.msra.mxu0 0.0
    %105 = vmatpush.msra.mxu0 0.0
    %106 = vmatpush.msra.mxu0 0.0
    %107 = vmatpush.msra.mxu0 0.0
    %108 = vmatpush.msra.mxu0 0.0
    %109 = vmatpush.msra.mxu0 0.0
    %110 = vmatpush.msra.mxu0 0.0
    %111 = vmatpush.msra.mxu0 %v73
    %112 = vmatpush.msra.mxu0 %v69
    %113 = vmatpush.msra.mxu0 %v65
    %114 = vmatpush.msra.mxu0 %v61
    %115 = vmatmul.f32.gmra.mxu0 %v77
    %v116 = vpop.f32.mrf.mxu0
    %v117 = vadd.f32 0.0, %v116
    %118 = vdwg.mxu0
    %119 = vmatpush.msra.mxu0 0.0
    %120 = vmatpush.msra.mxu0 0.0
    %121 = vmatpush.msra.mxu0 0.0
    %122 = vmatpush.msra.mxu0 0.0
    %123 = vmatpush.msra.mxu0 0.0
    %124 = vmatpush.msra.mxu0 0.0
    %125 = vmatpush.msra.mxu0 0.0
    %126 = vmatpush.msra.mxu0 0.0
    %127 = vmatpush.msra.mxu0 0.0
    %128 = vmatpush.msra.mxu0 0.0
    %129 = vmatpush.msra.mxu0 0.0
    %130 = vmatpush.msra.mxu0 0.0
    %131 = vmatpush.msra.mxu0 %v74
    %132 = vmatpush.msra.mxu0 %v70
    %133 = vmatpush.msra.mxu0 %v66
    %134 = vmatpush.msra.mxu0 %v62
    %135 = vmatmul.f32.gmra.mxu0 %v77
    %v136 = vpop.f32.mrf.mxu0
    %v137 = vadd.f32 0.0, %v136
    %138 = vdwg.mxu0
    %139 = vmatpush.msra.mxu0 0.0
    %140 = vmatpush.msra.mxu0 0.0
    %141 = vmatpush.msra.mxu0 0.0
    %142 = vmatpush.msra.mxu0 0.0
    %143 = vmatpush.msra.mxu0 0.0
    %144 = vmatpush.msra.mxu0 0.0
    %145 = vmatpush.msra.mxu0 0.0
    %146 = vmatpush.msra.mxu0 0.0
    %147 = vmatpush.msra.mxu0 0.0
    %148 = vmatpush.msra.mxu0 0.0
    %149 = vmatpush.msra.mxu0 0.0
    %150 = vmatpush.msra.mxu0 0.0
    %151 = vmatpush.msra.mxu0 %v75
    %152 = vmatpush.msra.mxu0 %v71
    %153 = vmatpush.msra.mxu0 %v67
    %154 = vmatpush.msra.mxu0 %v63
    %155 = vmatmul.f32.gmra.mxu0 %v77
    %v156 = vpop.f32.mrf.mxu0
    %v157 = vadd.f32 0.0, %v156
    %158 = vdwg.mxu0
    %v159 = vmax.f32 %v97, %v117
    %v160 = vmax.f32 %v159, %v137
    %v161 = vmax.f32 %v160, %v157
    %162 = vst [vmem:[#allocation7] sm:$0xff] %v161
    // Predicated region
    $region18: #{tpu_custom_call.1} parent=1 // pred_check
      _
    $region19: #{tpu_custom_call.1} parent=1 // pred_check_branch
      %164 = sbr.rel (0) target = $region21
    $region20: #{tpu_custom_call.1} parent=1 // pred_region
      %166 = vsyncadd [#allocation4], 0
      %s168 = sshll.u32 [#allocation7], 4
      %s169 = int_to_ptr.vmem [resolvable:$true] %s168
      %s170 = sshll.u32 %s2, 4
      %s171 = int_to_ptr.hbm [resolvable:$true] %s170
      %173 = dma.vmem_to_hbm [thread:$0]  %s169, 128, %s171, [#allocation4]
    $region21: #{tpu_custom_call.1} parent=1 // pred_fallthru
      _
    // Predicated region
    $region22: #{tpu_custom_call.1} parent=1 // pred_check
      _
    $region23: #{tpu_custom_call.1} parent=1 // pred_check_branch
      %175 = sbr.rel (0) target = $region25
    $region24: #{tpu_custom_call.1} parent=1 // pred_region
      %177 = dma.done [#allocation4], 128
    $region25: #{tpu_custom_call.1} parent=1 // pred_fallthru
      _
    %178 = vsyncpa [#allocation3], 1
    %179 = vsyncpa [#allocation6], 1
    %180 = vsyncpa [#allocation4], 1

</llo_original>
